<compile_context>
chip_gen: v7x
topology: tpu7x:2x2x1
jax: 0.10.0
libtpu: 0.0.40
codegen_flags: <defaults>
</compile_context>

<pallas_src>
import functools

import jax
import jax.numpy as jnp
from jax.experimental import pallas as pl
from jax.experimental.pallas import tpu as pltpu

INPUT_SIZE = 36      # L
NUM_CHANNELS = 5     # C_in
NUM_CLASSES = 5
CONV_OUT = 16        # conv1 output channels
HIDDEN = 128         # fc1 hidden size
KSIZE = 3            # conv1 kernel size (padding=1)
LANE = 128


def _round_up(n, m):
    return (n + m - 1) // m * m


def prepare_params(params, L=INPUT_SIZE):
    """One-time weight packing (pure layout plumbing, runs under XLA once).

    Returns (w_conv, b_conv, w1t, b1, w2t, b2) where:
      w_conv : (C*L, 2*HALF) bf16 block-Toeplitz conv matrix, columns ordered
               [even taps (torch flat order) | zeros | odd taps | zeros]
      b_conv : (1, 2*HALF)   f32 conv bias broadcast into the same lane layout
      w1t    : (HALF, HIDDEN) bf16 fc1 weight^T, zero rows for the pad lanes
      b1     : (1, HIDDEN)    f32
      w2t    : (HIDDEN, 128)  bf16 fc2 weight^T, zero-padded to 128 lanes
      b2     : (1, 128)       f32
    """
    wc, bc, w1, b1, w2, b2 = params
    O, C, K = wc.shape
    assert L % 2 == 0, "maxpool(k=2,s=2) path assumes even length"
    pad = (K - 1) // 2
    Lh = L // 2
    pooln = O * Lh                      # 288 = torch flatten size
    half = _round_up(pooln, LANE)       # 384 = vreg-aligned slab width

    wc = wc.astype(jnp.float32)
    # T[c*L + lx, o*L + l] = wc[o, c, lx - l + pad]  (0 outside the kernel taps)
    lx = jnp.arange(L)[:, None]
    ll = jnp.arange(L)[None, :]
    kk = lx - ll + pad                                   # (Lx, L)
    valid = (kk >= 0) & (kk < K)
    w_g = wc[:, :, jnp.clip(kk, 0, K - 1)]               # (O, C, Lx, L)
    w_g = jnp.where(valid[None, None], w_g, 0.0)
    T = jnp.transpose(w_g, (1, 2, 0, 3)).reshape(C * L, O * L)

    j = jnp.arange(pooln)
    o_idx, p_idx = j // Lh, j % Lh
    col_even = o_idx * L + 2 * p_idx                     # torch flat order -> even tap
    zcols = jnp.zeros((C * L, half - pooln), jnp.float32)
    w_conv = jnp.concatenate(
        [T[:, col_even], zcols, T[:, col_even + 1], zcols], axis=1)   # (C*L, 2*half)

    b_half = jnp.concatenate(
        [bc.astype(jnp.float32)[o_idx], jnp.zeros((half - pooln,), jnp.float32)])
    b_conv = jnp.concatenate([b_half, b_half])[None, :]               # (1, 2*half) f32

    w1t = jnp.concatenate(
        [w1.astype(jnp.float32).T,
         jnp.zeros((half - pooln, w1.shape[0]), jnp.float32)], axis=0)  # (half, HIDDEN)
    b1r = b1.astype(jnp.float32).reshape(1, -1)                         # (1, HIDDEN) f32

    out_pad = _round_up(NUM_CLASSES, LANE)                              # 128 lanes
    w2t = jnp.zeros((w2.shape[1], out_pad), jnp.float32)
    w2t = w2t.at[:, :w2.shape[0]].set(w2.astype(jnp.float32).T)         # (HIDDEN, 128)
    b2r = jnp.zeros((1, out_pad), jnp.float32)
    b2r = b2r.at[0, :b2.shape[0]].set(b2.astype(jnp.float32))           # (1, 128) f32

    # bf16 storage for everything that feeds the MXU (single-pass matmuls,
    # halved weight DMA / vreg footprint); biases stay f32 for VPU adds.
    return (w_conv.astype(jnp.bfloat16), b_conv,
            w1t.astype(jnp.bfloat16), b1r,
            w2t.astype(jnp.bfloat16), b2r)


def simple_cnn_kernel(x_ref, wc_ref, bc_ref, w1t_ref, b1_ref, w2t_ref, b2_ref,
                      out_ref):
    """One batch tile, fully in VMEM: 3 bf16 MXU matmuls + VPU relu / maxpool.

    x_ref   : (Bt, C*L)  bf16  flattened input tile
    wc_ref  : (C*L, 2*HALF) bf16  Toeplitz conv matrix (even|pad|odd columns)
    bc_ref  : (1, 2*HALF) f32  conv bias, pre-broadcast to lane layout
    w1t_ref : (HALF, HIDDEN) bf16  fc1 weight^T (pad rows are zero)
    b1_ref  : (1, HIDDEN) f32
    w2t_ref : (HIDDEN, 128) bf16  fc2 weight^T, zero-padded to 128 lanes
    b2_ref  : (1, 128) f32
    out_ref : (Bt, 128) bf16  lane-dense logits (first NUM_CLASSES valid)
    """
    x = x_ref[...]                                            # (Bt, C*L) bf16
    # Conv1d(C->O, k=3, pad=1) as a single Toeplitz matmul; bias + ReLU on VPU.
    conv = jnp.dot(x, wc_ref[...], preferred_element_type=jnp.float32)
    conv = jnp.maximum(conv + bc_ref[...], 0.0)               # (Bt, 2*HALF) f32
    half = conv.shape[1] // 2                                 # 384 (3 vregs)
    # MaxPool(k=2,s=2) + torch flatten: one max of two aligned lane slabs.
    pooled = jnp.maximum(conv[:, :half], conv[:, half:])      # (Bt, HALF) f32
    # fc1 + ReLU (bf16 single-pass matmul, f32 accumulate + bias)
    h = jnp.dot(pooled.astype(jnp.bfloat16), w1t_ref[...],
                preferred_element_type=jnp.float32)
    h = jnp.maximum(h + b1_ref[...], 0.0)                     # (Bt, HIDDEN) f32
    # fc2 (lane-dense, 128-wide bf16 store)
    out = jnp.dot(h.astype(jnp.bfloat16), w2t_ref[...],
                  preferred_element_type=jnp.float32)
    out_ref[...] = (out + b2_ref[...]).astype(out_ref.dtype)


@functools.partial(jax.jit, static_argnames=("block_b",))
def simple_cnn_forward(x, packed, *, block_b=512):
    """Batch-tiled forward pass. `packed` comes from prepare_params()."""
    w_conv, b_conv, w1t, b1r, w2t, b2r = packed
    B, C, L = x.shape
    cl = C * L
    nconv = w_conv.shape[1]
    half = nconv // 2
    out_pad = w2t.shape[1]

    # >=2 grid steps whenever B > 8 (both v7x TensorCores get work via
    # dimension_semantics=("parallel",)), capped at block_b so each step still
    # fills the MXU and amortizes the ~0.35us per-step pipeline overhead.
    bt = min(block_b, _round_up(max(pl.cdiv(B, 2), 8), 8))
    b_pad = _round_up(B, bt)
    x_flat = x.astype(jnp.bfloat16).reshape(B, cl)
    if b_pad != B:
        x_flat = jnp.pad(x_flat, ((0, b_pad - B), (0, 0)))

    flops = 2 * b_pad * (cl * nconv + half * HIDDEN + HIDDEN * out_pad)
    bytes_accessed = (b_pad * (cl + out_pad) * 2                         # x + out (bf16)
                      + (cl * nconv + half * HIDDEN + HIDDEN * out_pad) * 2  # weights
                      + (2 * nconv + HIDDEN + out_pad) * 4)              # f32 biases

    const = lambda i: (0, 0)                   # weights resident across grid steps
    out = pl.pallas_call(
        simple_cnn_kernel,
        out_shape=jax.ShapeDtypeStruct((b_pad, out_pad), jnp.bfloat16),
        grid_spec=pltpu.PrefetchScalarGridSpec(
            num_scalar_prefetch=0,
            grid=(b_pad // bt,),
            in_specs=[
                pl.BlockSpec((bt, cl), lambda i: (i, 0)),
                pl.BlockSpec((cl, nconv), const),
                pl.BlockSpec((1, nconv), const),
                pl.BlockSpec((half, HIDDEN), const),
                pl.BlockSpec((1, HIDDEN), const),
                pl.BlockSpec((HIDDEN, out_pad), const),
                pl.BlockSpec((1, out_pad), const),
            ],
            out_specs=pl.BlockSpec((bt, out_pad), lambda i: (i, 0)),
        ),
        compiler_params=pltpu.CompilerParams(
            dimension_semantics=("parallel",),   # batch axis -> both TCs on v7x
            # Only needed for very large tiles; stays under v7x's 64 MiB physical.
            vmem_limit_bytes=(48 << 20) if bt > 1024 else None),
        cost_estimate=pl.CostEstimate(flops=flops, transcendentals=0,
                                      bytes_accessed=bytes_accessed),
    )(x_flat, w_conv, b_conv, w1t, b1r, w2t, b2r)
    return out[:B, :NUM_CLASSES].astype(jnp.float32)


def reference_forward(x, params):
    """Pure-JAX f32 reference matching the PyTorch module exactly."""
    wc, bc, w1, b1, w2, b2 = params
    B, C, L = x.shape
    O, _, K = wc.shape
    hp = jax.lax.Precision.HIGHEST              # exact f32 reference (local, not global)
    xp = jnp.pad(x, ((0, 0), (0, 0), (1, 1)))
    acc = jnp.zeros((B, O, L), jnp.float32)
    for k in range(K):
        acc = acc + jnp.einsum('oc,bcl->bol', wc[:, :, k], xp[:, :, k:k + L],
                               precision=hp)
    acc = jnp.maximum(acc + bc[None, :, None], 0.0)
    pooled = jnp.max(acc.reshape(B, O, L // 2, 2), axis=-1)
    flat = pooled.reshape(B, -1)
    h = jnp.maximum(jnp.dot(flat, w1.T, precision=hp) + b1, 0.0)
    return jnp.dot(h, w2.T, precision=hp) + b2


def init_params(key):
    """Deterministic synthetic parameters with the module's shapes."""
    k = jax.random.split(key, 6)
    wc = 0.1 * jax.random.normal(k[0], (CONV_OUT, NUM_CHANNELS, KSIZE), jnp.float32)
    bc = 0.1 * jax.random.normal(k[1], (CONV_OUT,), jnp.float32)
    w1 = 0.05 * jax.random.normal(k[2], (HIDDEN, CONV_OUT * INPUT_SIZE // 2), jnp.float32)
    b1 = 0.05 * jax.random.normal(k[3], (HIDDEN,), jnp.float32)
    w2 = 0.05 * jax.random.normal(k[4], (NUM_CLASSES, HIDDEN), jnp.float32)
    b2 = 0.05 * jax.random.normal(k[5], (NUM_CLASSES,), jnp.float32)
    return wc, bc, w1, b1, w2, b2


if __name__ == "__main__":
    root = jax.random.PRNGKey(0)
    key_params, key_x = jax.random.split(root)
    params = init_params(key_params)
    packed = prepare_params(params)            # one-time bf16 weight packing

    batch = 2
    x = jax.random.normal(key_x, (batch, NUM_CHANNELS, INPUT_SIZE), jnp.float32)

    out = simple_cnn_forward(x, packed)
    out = jax.block_until_ready(out)

    assert out.shape == (batch, NUM_CLASSES), out.shape
    assert bool(jnp.all(jnp.isfinite(out)))

    ref = reference_forward(x, params)
    # bf16 single-pass matmuls + bf16 output store: expected abs error is a few
    # 1e-3 on O(0.1) logits, so compare at a bf16-appropriate tolerance.
    assert bool(jnp.allclose(out, ref, rtol=2e-2, atol=2e-2)), (out, ref)

    print("KERNEL_OK")
</pallas_src>

<mosaic_0001>
module attributes {stable_mosaic.version = 11 : i64} {
  func.func @simple_cnn_kernel(%arg0: i32, %arg1: memref<8x180xbf16, #tpu.memory_space<vmem>>, %arg2: memref<180x768xbf16, #tpu.memory_space<vmem>>, %arg3: memref<1x768xf32, #tpu.memory_space<vmem>>, %arg4: memref<384x128xbf16, #tpu.memory_space<vmem>>, %arg5: memref<1x128xf32, #tpu.memory_space<vmem>>, %arg6: memref<128x128xbf16, #tpu.memory_space<vmem>>, %arg7: memref<1x128xf32, #tpu.memory_space<vmem>>, %arg8: memref<8x128xbf16, #tpu.memory_space<vmem>>) attributes {dimension_semantics = [#tpu.dimension_semantics<parallel>], iteration_bounds = array<i64: 1>, scalar_prefetch = 0 : i64, scratch_operands = 0 : i64, tpu.core_type = #tpu.core_type<tc>, window_params = [{transform_indices = @transform_0, window_bounds = array<i64: 8, 180>}, {pipeline_mode = #tpu.pipeline_mode<synchronous>, transform_indices = @transform_1, window_bounds = array<i64: 180, 768>}, {pipeline_mode = #tpu.pipeline_mode<synchronous>, transform_indices = @transform_2, window_bounds = array<i64: 1, 768>}, {pipeline_mode = #tpu.pipeline_mode<synchronous>, transform_indices = @transform_3, window_bounds = array<i64: 384, 128>}, {pipeline_mode = #tpu.pipeline_mode<synchronous>, transform_indices = @transform_4, window_bounds = array<i64: 1, 128>}, {pipeline_mode = #tpu.pipeline_mode<synchronous>, transform_indices = @transform_5, window_bounds = array<i64: 128, 128>}, {pipeline_mode = #tpu.pipeline_mode<synchronous>, transform_indices = @transform_6, window_bounds = array<i64: 1, 128>}, {transform_indices = @transform_7, window_bounds = array<i64: 8, 128>}]} {
    %c0 = arith.constant 0 : index
    %c0_0 = arith.constant 0 : index
    %0 = vector.load %arg1[%c0, %c0_0] : memref<8x180xbf16, #tpu.memory_space<vmem>>, vector<8x180xbf16>
    %c0_1 = arith.constant 0 : index
    %c0_2 = arith.constant 0 : index
    %1 = vector.load %arg2[%c0_1, %c0_2] : memref<180x768xbf16, #tpu.memory_space<vmem>>, vector<180x768xbf16>
    %cst = arith.constant dense<0.000000e+00> : vector<8x768xf32>
    %2 = tpu.matmul %0, %1, %cst {dimension_numbers = #tpu.dot_dimension_numbers<[1], [0], [0], [1], [0, 0, 1, 1], [], []>} : vector<8x180xbf16>, vector<180x768xbf16>, vector<8x768xf32> -> vector<8x768xf32>
    %c0_3 = arith.constant 0 : index
    %c0_4 = arith.constant 0 : index
    %3 = vector.load %arg3[%c0_3, %c0_4] : memref<1x768xf32, #tpu.memory_space<vmem>>, vector<1x768xf32>
    %4 = vector.broadcast %3 : vector<1x768xf32> to vector<8x768xf32>
    %5 = arith.addf %2, %4 : vector<8x768xf32>
    %cst_5 = arith.constant 0.000000e+00 : f32
    %6 = vector.broadcast %cst_5 : f32 to vector<8x768xf32>
    %7 = arith.maximumf %5, %6 : vector<8x768xf32>
    %8 = vector.extract_strided_slice %7 {offsets = [0, 0], sizes = [8, 384], strides = [1, 1]} : vector<8x768xf32> to vector<8x384xf32>
    %9 = vector.extract_strided_slice %7 {offsets = [0, 384], sizes = [8, 384], strides = [1, 1]} : vector<8x768xf32> to vector<8x384xf32>
    %10 = arith.maximumf %8, %9 : vector<8x384xf32>
    %11 = arith.truncf %10 : vector<8x384xf32> to vector<8x384xbf16>
    %c0_6 = arith.constant 0 : index
    %c0_7 = arith.constant 0 : index
    %12 = vector.load %arg4[%c0_6, %c0_7] : memref<384x128xbf16, #tpu.memory_space<vmem>>, vector<384x128xbf16>
    %cst_8 = arith.constant dense<0.000000e+00> : vector<8x128xf32>
    %13 = tpu.matmul %11, %12, %cst_8 {dimension_numbers = #tpu.dot_dimension_numbers<[1], [0], [0], [1], [0, 0, 1, 1], [], []>} : vector<8x384xbf16>, vector<384x128xbf16>, vector<8x128xf32> -> vector<8x128xf32>
    %c0_9 = arith.constant 0 : index
    %c0_10 = arith.constant 0 : index
    %14 = vector.load %arg5[%c0_9, %c0_10] : memref<1x128xf32, #tpu.memory_space<vmem>>, vector<1x128xf32>
    %15 = vector.broadcast %14 : vector<1x128xf32> to vector<8x128xf32>
    %16 = arith.addf %13, %15 : vector<8x128xf32>
    %cst_11 = arith.constant 0.000000e+00 : f32
    %17 = vector.broadcast %cst_11 : f32 to vector<8x128xf32>
    %18 = arith.maximumf %16, %17 : vector<8x128xf32>
    %19 = arith.truncf %18 : vector<8x128xf32> to vector<8x128xbf16>
    %c0_12 = arith.constant 0 : index
    %c0_13 = arith.constant 0 : index
    %20 = vector.load %arg6[%c0_12, %c0_13] : memref<128x128xbf16, #tpu.memory_space<vmem>>, vector<128x128xbf16>
    %cst_14 = arith.constant dense<0.000000e+00> : vector<8x128xf32>
    %21 = tpu.matmul %19, %20, %cst_14 {dimension_numbers = #tpu.dot_dimension_numbers<[1], [0], [0], [1], [0, 0, 1, 1], [], []>} : vector<8x128xbf16>, vector<128x128xbf16>, vector<8x128xf32> -> vector<8x128xf32>
    %c0_15 = arith.constant 0 : index
    %c0_16 = arith.constant 0 : index
    %22 = vector.load %arg7[%c0_15, %c0_16] : memref<1x128xf32, #tpu.memory_space<vmem>>, vector<1x128xf32>
    %23 = vector.broadcast %22 : vector<1x128xf32> to vector<8x128xf32>
    %24 = arith.addf %21, %23 : vector<8x128xf32>
    %25 = arith.truncf %24 : vector<8x128xf32> to vector<8x128xbf16>
    %c0_17 = arith.constant 0 : index
    %c0_18 = arith.constant 0 : index
    %26 = vector.load %arg8[%c0_17, %c0_18] : memref<8x128xbf16, #tpu.memory_space<vmem>>, vector<8x128xbf16>
    tpu.vector_store %arg8[%c0_17, %c0_18], %25 {strides = array<i32>} : memref<8x128xbf16, #tpu.memory_space<vmem>>, vector<8x128xbf16>,
    return
  }
  func.func @transform_0(%arg0: i32) -> (i32, i32) {
    %c0_i32 = arith.constant 0 : i32
    %c0_i32_0 = arith.constant 0 : i32
    return %arg0, %c0_i32 : i32, i32
  }
  func.func @transform_1(%arg0: i32) -> (i32, i32) {
    %c0_i32 = arith.constant 0 : i32
    %c0_i32_0 = arith.constant 0 : i32
    %c0_i32_1 = arith.constant 0 : i32
    return %c0_i32, %c0_i32_0 : i32, i32
  }
  func.func @transform_2(%arg0: i32) -> (i32, i32) {
    %c0_i32 = arith.constant 0 : i32
    %c0_i32_0 = arith.constant 0 : i32
    %c0_i32_1 = arith.constant 0 : i32
    return %c0_i32, %c0_i32_0 : i32, i32
  }
  func.func @transform_3(%arg0: i32) -> (i32, i32) {
    %c0_i32 = arith.constant 0 : i32
    %c0_i32_0 = arith.constant 0 : i32
    %c0_i32_1 = arith.constant 0 : i32
    return %c0_i32, %c0_i32_0 : i32, i32
  }
  func.func @transform_4(%arg0: i32) -> (i32, i32) {
    %c0_i32 = arith.constant 0 : i32
    %c0_i32_0 = arith.constant 0 : i32
    %c0_i32_1 = arith.constant 0 : i32
    return %c0_i32, %c0_i32_0 : i32, i32
  }
  func.func @transform_5(%arg0: i32) -> (i32, i32) {
    %c0_i32 = arith.constant 0 : i32
    %c0_i32_0 = arith.constant 0 : i32
    %c0_i32_1 = arith.constant 0 : i32
    return %c0_i32, %c0_i32_0 : i32, i32
  }
  func.func @transform_6(%arg0: i32) -> (i32, i32) {
    %c0_i32 = arith.constant 0 : i32
    %c0_i32_0 = arith.constant 0 : i32
    %c0_i32_1 = arith.constant 0 : i32
    return %c0_i32, %c0_i32_0 : i32, i32
  }
  func.func @transform_7(%arg0: i32) -> (i32, i32) {
    %c0_i32 = arith.constant 0 : i32
    %c0_i32_0 = arith.constant 0 : i32
    return %arg0, %c0_i32 : i32, i32
  }
}

</mosaic_0001>

<llo_original>
// kernel: simple_cnn_forward.1
$region0: #{simple_cnn_forward.1}
  #allocation0 [shape = 'u32[]', space=smem, size = 0x4, offset = 0x4, fixed_abs, tag = 'smem constant byte address 0x4 - core index']
  #allocation1 [shape = 'u32[144,128]{1,0:T(1,128)}', space=vmem, size = 0x12000, scoped, tag = 'internal scratch']
  %s0 = inlined_call_operand.vmem [shape: bf16[8,180], index: 0, kind: input, shape index: {}]
  %s1 = inlined_call_operand.hbm [shape: bf16[180,768], index: 1, kind: input, shape index: {}]
  %s2 = inlined_call_operand.hbm [shape: f32[1,768], index: 2, kind: input, shape index: {}]
  %s3 = inlined_call_operand.hbm [shape: bf16[384,128], index: 3, kind: input, shape index: {}]
  %s4 = inlined_call_operand.vmem [shape: f32[1,128], index: 4, kind: input, shape index: {}]
  %s5 = inlined_call_operand.vmem [shape: bf16[128,128], index: 5, kind: input, shape index: {}]
  %s6 = inlined_call_operand.vmem [shape: f32[1,128], index: 6, kind: input, shape index: {}]
  %s7 = inlined_call_operand.vmem [shape: bf16[8,128], index: 7, kind: output, shape index: {}]
  %s8 = sld [smem:[#allocation0]]
  $region50: #{simple_cnn_forward.1} parent=0
    _
  %s10 = ssub.s32 1, %s8
  %s11 = scalar_select 0, %s10, %s8
  $region1: #{simple_cnn_forward.1} parent=0
    #allocation2 [shape = 'u8[282624]{0}', space=vmem, size = 0x45000, scoped, tag = 'input window, operand 1, single buffered']
    #allocation3 [shape = 's32[1]{0}', space=sflag, size = 0x4, scoped, tag = 'scoped memory for simple_cnn_forward.1']
    #allocation4 [shape = 'u8[3072]{0}', space=vmem, size = 0xc00, scoped, tag = 'input window, operand 2, single buffered']
    #allocation5 [shape = 's32[1]{0}', space=sflag, size = 0x4, scoped, tag = 'scoped memory for simple_cnn_forward.1']
    #allocation6 [shape = 'u8[98304]{0}', space=vmem, size = 0x18000, scoped, tag = 'input window, operand 3, single buffered']
    %12 = vsyncpa [#allocation3], 0
    %13 = vsyncpa [#allocation5], 0
    // Predicated region
    $region2: #{simple_cnn_forward.1} parent=1 // pred_check
      _
    $region3: #{simple_cnn_forward.1} parent=1 // pred_check_branch
      %15 = sbr.rel (0) target = $region5
    $region4: #{simple_cnn_forward.1} parent=1 // pred_region
      _
    $region5: #{simple_cnn_forward.1} parent=1 // pred_fallthru
      _
    // Predicated region
    $region6: #{simple_cnn_forward.1} parent=1 // pred_check
      _
    $region7: #{simple_cnn_forward.1} parent=1 // pred_check_branch
      %17 = sbr.rel (0) target = $region9
    $region8: #{simple_cnn_forward.1} parent=1 // pred_region
      %s19 = ssub.s32 8832, 8832
      %20 = vsyncadd [#allocation3], %s19
      %s21 = sshll.u32 [#allocation2], 4
      %s22 = int_to_ptr.vmem [resolvable:$true] %s21
      %27 = dma.hbm_to_vmem [thread:$0]  %s1, 8832, %s22, [#allocation3], 384, 384, 24
    $region9: #{simple_cnn_forward.1} parent=1 // pred_fallthru
      _
    // Predicated region
    $region10: #{simple_cnn_forward.1} parent=1 // pred_check
      _
    $region11: #{simple_cnn_forward.1} parent=1 // pred_check_branch
      %29 = sbr.rel (0) target = $region13
    $region12: #{simple_cnn_forward.1} parent=1 // pred_region
      %s31 = ssub.s32 96, 96
      %32 = vsyncadd [#allocation5], %s31
      %s34 = sshll.u32 [#allocation4], 4
      %s35 = int_to_ptr.vmem [resolvable:$true] %s34
      %37 = dma.hbm_to_vmem [thread:$0]  %s2, 96, %s35, [#allocation5]
    $region13: #{simple_cnn_forward.1} parent=1 // pred_fallthru
      _
    // Predicated region
    $region14: #{simple_cnn_forward.1} parent=1 // pred_check
      _
    $region15: #{simple_cnn_forward.1} parent=1 // pred_check_branch
      %39 = sbr.rel (0) target = $region17
    $region16: #{simple_cnn_forward.1} parent=1 // pred_region
      %s41 = ssub.s32 3072, 3072
      %42 = vsyncadd [#allocation5], %s41
      %s43 = sshll.u32 [#allocation6], 4
      %s44 = int_to_ptr.vmem [resolvable:$true] %s43
      %49 = dma.hbm_to_vmem [thread:$0]  %s3, 3072, %s44, [#allocation5], 64, 64, 4
    $region17: #{simple_cnn_forward.1} parent=1 // pred_fallthru
      _
    // Predicated region
    $region18: #{simple_cnn_forward.1} parent=1 // pred_check
      _
    $region19: #{simple_cnn_forward.1} parent=1 // pred_check_branch
      %51 = sbr.rel (0) target = $region21
    $region20: #{simple_cnn_forward.1} parent=1 // pred_region
      _
    $region21: #{simple_cnn_forward.1} parent=1 // pred_fallthru
      _
    // Predicated region
    $region22: #{simple_cnn_forward.1} parent=1 // pred_check
      _
    $region23: #{simple_cnn_forward.1} parent=1 // pred_check_branch
      %53 = sbr.rel (0) target = $region25
    $region24: #{simple_cnn_forward.1} parent=1 // pred_region
      _
    $region25: #{simple_cnn_forward.1} parent=1 // pred_fallthru
      _
    // Predicated region
    $region26: #{simple_cnn_forward.1} parent=1 // pred_check
      _
    $region27: #{simple_cnn_forward.1} parent=1 // pred_check_branch
      %55 = sbr.rel (0) target = $region29
    $region28: #{simple_cnn_forward.1} parent=1 // pred_region
      _
    $region29: #{simple_cnn_forward.1} parent=1 // pred_fallthru
      _
    // Predicated region
    $region30: #{simple_cnn_forward.1} parent=1 // pred_check
      _
    $region31: #{simple_cnn_forward.1} parent=1 // pred_check_branch
      %57 = sbr.rel (0) target = $region33
    $region32: #{simple_cnn_forward.1} parent=1 // pred_region
      %58 = dma.done [#allocation3], 8832
    $region33: #{simple_cnn_forward.1} parent=1 // pred_fallthru
      _
    // Predicated region
    $region34: #{simple_cnn_forward.1} parent=1 // pred_check
      _
    $region35: #{simple_cnn_forward.1} parent=1 // pred_check_branch
      %60 = sbr.rel (0) target = $region37
    $region36: #{simple_cnn_forward.1} parent=1 // pred_region
      %61 = dma.done [#allocation5], 96
    $region37: #{simple_cnn_forward.1} parent=1 // pred_fallthru
      _
    // Predicated region
    $region38: #{simple_cnn_forward.1} parent=1 // pred_check
      _
    $region39: #{simple_cnn_forward.1} parent=1 // pred_check_branch
      %63 = sbr.rel (0) target = $region41
    $region40: #{simple_cnn_forward.1} parent=1 // pred_region
      %64 = dma.done [#allocation5], 3072
    $region41: #{simple_cnn_forward.1} parent=1 // pred_fallthru
      _
    %v66 = vld [vmem:[%s0] sm:$0xff]
    %v67 = vld [vmem:[#allocation2] sm:$0xff]
    %v68 = vld [vmem:[#allocation2 + $0x8] sm:$0xff]
    %v69 = vld [vmem:[#allocation2 + $0x10] sm:$0xff]
    %v70 = vld [vmem:[#allocation2 + $0x18] sm:$0xff]
    %v71 = vld [vmem:[#allocation2 + $0x20] sm:$0xff]
    %v72 = vld [vmem:[#allocation2 + $0x28] sm:$0xff]
    %v73 = vld [vmem:[#allocation2 + $0x30] sm:$0xff]
    %v74 = vld [vmem:[#allocation2 + $0x38] sm:$0xff]
    %v75 = vld [vmem:[#allocation2 + $0x40] sm:$0xff]
    %v76 = vld [vmem:[#allocation2 + $0x48] sm:$0xff]
    %v77 = vld [vmem:[#allocation2 + $0x50] sm:$0xff]
    %v78 = vld [vmem:[#allocation2 + $0x58] sm:$0xff]
    %v79 = vld [vmem:[#allocation2 + $0x60] sm:$0xff]
    %v80 = vld [vmem:[#allocation2 + $0x68] sm:$0xff]
    %v81 = vld [vmem:[#allocation2 + $0x70] sm:$0xff]
    %v82 = vld [vmem:[#allocation2 + $0x78] sm:$0xff]
    %v83 = vld [vmem:[#allocation2 + $0x80] sm:$0xff]
    %v84 = vld [vmem:[#allocation2 + $0x88] sm:$0xff]
    %v85 = vld [vmem:[#allocation2 + $0x90] sm:$0xff]
    %v86 = vld [vmem:[#allocation2 + $0x98] sm:$0xff]
    %v87 = vld [vmem:[#allocation2 + $0xa0] sm:$0xff]
    %v88 = vld [vmem:[#allocation2 + $0xa8] sm:$0xff]
    %v89 = vld [vmem:[#allocation2 + $0xb0] sm:$0xff]
    %v90 = vld [vmem:[#allocation2 + $0xb8] sm:$0xff]
    %v91 = vld [vmem:[#allocation2 + $0xc0] sm:$0xff]
    %v92 = vld [vmem:[#allocation2 + $0xc8] sm:$0xff]
    %v93 = vld [vmem:[#allocation2 + $0xd0] sm:$0xff]
    %v94 = vld [vmem:[#allocation2 + $0xd8] sm:$0xff]
    %v95 = vld [vmem:[#allocation2 + $0xe0] sm:$0xff]
    %v96 = vld [vmem:[#allocation2 + $0xe8] sm:$0xff]
    %v97 = vld [vmem:[#allocation2 + $0xf0] sm:$0xff]
    %v98 = vld [vmem:[#allocation2 + $0xf8] sm:$0xff]
    %v99 = vld [vmem:[#allocation2 + $0x100] sm:$0xff]
    %v100 = vld [vmem:[#allocation2 + $0x108] sm:$0xff]
    %v101 = vld [vmem:[#allocation2 + $0x110] sm:$0xff]
    %v102 = vld [vmem:[#allocation2 + $0x118] sm:$0xff]
    %v103 = vld [vmem:[#allocation2 + $0x120] sm:$0xff]
    %v104 = vld [vmem:[#allocation2 + $0x128] sm:$0xff]
    %v105 = vld [vmem:[#allocation2 + $0x130] sm:$0xff]
    %v106 = vld [vmem:[#allocation2 + $0x138] sm:$0xff]
    %v107 = vld [vmem:[#allocation2 + $0x140] sm:$0xff]
    %v108 = vld [vmem:[#allocation2 + $0x148] sm:$0xff]
    %v109 = vld [vmem:[#allocation2 + $0x150] sm:$0xff]
    %v110 = vld [vmem:[#allocation2 + $0x158] sm:$0xff]
    %v111 = vld [vmem:[#allocation2 + $0x160] sm:$0xff]
    %v112 = vld [vmem:[#allocation2 + $0x168] sm:$0xff]
    %v113 = vld [vmem:[#allocation2 + $0x170] sm:$0xff]
    %v114 = vld [vmem:[#allocation2 + $0x178] sm:$0xff]
    %v115 = vld [vmem:[#allocation2 + $0x180] sm:$0xff]
    %v116 = vld [vmem:[#allocation2 + $0x188] sm:$0xff]
    %v117 = vld [vmem:[#allocation2 + $0x190] sm:$0xff]
    %v118 = vld [vmem:[#allocation2 + $0x198] sm:$0xff]
    %v119 = vld [vmem:[#allocation2 + $0x1a0] sm:$0xff]
    %v120 = vld [vmem:[#allocation2 + $0x1a8] sm:$0xff]
    %v121 = vld [vmem:[#allocation2 + $0x1b0] sm:$0xff]
    %v122 = vld [vmem:[#allocation2 + $0x1b8] sm:$0xff]
    %v123 = vld [vmem:[#allocation2 + $0x1c0] sm:$0xff]
    %v124 = vld [vmem:[#allocation2 + $0x1c8] sm:$0xff]
    %v125 = vld [vmem:[#allocation2 + $0x1d0] sm:$0xff]
    %v126 = vld [vmem:[#allocation2 + $0x1d8] sm:$0xff]
    %v127 = vld [vmem:[#allocation2 + $0x1e0] sm:$0xff]
    %v128 = vld [vmem:[#allocation2 + $0x1e8] sm:$0xff]
    %v129 = vld [vmem:[#allocation2 + $0x1f0] sm:$0xff]
    %v130 = vld [vmem:[#allocation2 + $0x1f8] sm:$0xff]
    %v131 = vld [vmem:[#allocation2 + $0x200] sm:$0xff]
    %v132 = vld [vmem:[#allocation2 + $0x208] sm:$0xff]
    %v133 = vld [vmem:[#allocation2 + $0x210] sm:$0x33]
    %v134 = vld [vmem:[#allocation2 + $0x218] sm:$0x33]
    %v135 = vld [vmem:[#allocation2 + $0x220] sm:$0x33]
    %v136 = vld [vmem:[#allocation4] sm:$0x3f]
    %v138 = vlaneseq
    %v139 = vshrl.u32 %v138, 7
    %v140 = vsub.s32 0, %v139
    %v141 = vrot.slane %v136, %v140
    %v142 = vlaneseq
    %v143 = vshrl.u32 %v142, 7
    %v144 = vsub.s32 1, %v143
    %v145 = vrot.slane %v136, %v144
    %v146 = vlaneseq
    %v147 = vshrl.u32 %v146, 7
    %v148 = vsub.s32 2, %v147
    %v149 = vrot.slane %v136, %v148
    %v150 = vlaneseq
    %v151 = vshrl.u32 %v150, 7
    %v152 = vsub.s32 3, %v151
    %v153 = vrot.slane %v136, %v152
    %v154 = vlaneseq
    %v155 = vshrl.u32 %v154, 7
    %v156 = vsub.s32 4, %v155
    %v157 = vrot.slane %v136, %v156
    %v158 = vlaneseq
    %v159 = vshrl.u32 %v158, 7
    %v160 = vsub.s32 5, %v159
    %v161 = vrot.slane %v136, %v160
    %v169 = vunpack.c.l.b16 %v66
    %v170 = vunpack.c.h.b16 %v66
    %v171 = vpack.c.b16 %v169, %v169
    %v172 = vpack.c.b16 %v170, %v170
    %v243 = vunpack.c.l.b16 %v67
    %v244 = vunpack.c.h.b16 %v67
    %v245 = vunpack.c.l.b16 %v68
    %v246 = vunpack.c.h.b16 %v68
    %v247 = vunpack.c.l.b16 %v69
    %v248 = vunpack.c.h.b16 %v69
    %v249 = vunpack.c.l.b16 %v70
    %v250 = vunpack.c.h.b16 %v70
    %v251 = vunpack.c.l.b16 %v71
    %v252 = vunpack.c.h.b16 %v71
    %v253 = vunpack.c.l.b16 %v72
    %v254 = vunpack.c.h.b16 %v72
    %v255 = vunpack.c.l.b16 %v73
    %v256 = vunpack.c.h.b16 %v73
    %v257 = vunpack.c.l.b16 %v74
    %v258 = vunpack.c.h.b16 %v74
    %v259 = vunpack.c.l.b16 %v75
    %v260 = vunpack.c.h.b16 %v75
    %v261 = vunpack.c.l.b16 %v76
    %v262 = vunpack.c.h.b16 %v76
    %v263 = vunpack.c.l.b16 %v77
    %v264 = vunpack.c.h.b16 %v77
    %v265 = vunpack.c.l.b16 %v78
    %v266 = vunpack.c.h.b16 %v78
    %v267 = vunpack.c.l.b16 %v79
    %v268 = vunpack.c.h.b16 %v79
    %v269 = vunpack.c.l.b16 %v80
    %v270 = vunpack.c.h.b16 %v80
    %v271 = vunpack.c.l.b16 %v81
    %v272 = vunpack.c.h.b16 %v81
    %v273 = vunpack.c.l.b16 %v82
    %v274 = vunpack.c.h.b16 %v82
    %v275 = vunpack.c.l.b16 %v83
    %v276 = vunpack.c.h.b16 %v83
    %v277 = vunpack.c.l.b16 %v84
    %v278 = vunpack.c.h.b16 %v84
    %v279 = vunpack.c.l.b16 %v85
    %v280 = vunpack.c.h.b16 %v85
    %v281 = vunpack.c.l.b16 %v86
    %v282 = vunpack.c.h.b16 %v86
    %v283 = vunpack.c.l.b16 %v87
    %v284 = vunpack.c.h.b16 %v87
    %v285 = vunpack.c.l.b16 %v88
    %v286 = vunpack.c.h.b16 %v88
    %v287 = vunpack.c.l.b16 %v89
    %v288 = vunpack.c.h.b16 %v89
    %v289 = vunpack.c.l.b16 %v90
    %v290 = vunpack.c.h.b16 %v90
    %v291 = vunpack.c.l.b16 %v91
    %v292 = vunpack.c.h.b16 %v91
    %v293 = vunpack.c.l.b16 %v92
    %v294 = vunpack.c.h.b16 %v92
    %v295 = vunpack.c.l.b16 %v93
    %v296 = vunpack.c.h.b16 %v93
    %v297 = vunpack.c.l.b16 %v94
    %v298 = vunpack.c.h.b16 %v94
    %v299 = vunpack.c.l.b16 %v95
    %v300 = vunpack.c.h.b16 %v95
    %v301 = vunpack.c.l.b16 %v96
    %v302 = vunpack.c.h.b16 %v96
    %v303 = vunpack.c.l.b16 %v97
    %v304 = vunpack.c.h.b16 %v97
    %v305 = vunpack.c.l.b16 %v98
    %v306 = vunpack.c.h.b16 %v98
    %v307 = vunpack.c.l.b16 %v99
    %v308 = vunpack.c.h.b16 %v99
    %v309 = vunpack.c.l.b16 %v100
    %v310 = vunpack.c.h.b16 %v100
    %v311 = vunpack.c.l.b16 %v101
    %v312 = vunpack.c.h.b16 %v101
    %v313 = vunpack.c.l.b16 %v102
    %v314 = vunpack.c.h.b16 %v102
    %v315 = vunpack.c.l.b16 %v103
    %v316 = vunpack.c.h.b16 %v103
    %v317 = vunpack.c.l.b16 %v104
    %v318 = vunpack.c.h.b16 %v104
    %v319 = vunpack.c.l.b16 %v105
    %v320 = vunpack.c.h.b16 %v105
    %v321 = vunpack.c.l.b16 %v106
    %v322 = vunpack.c.h.b16 %v106
    %v323 = vunpack.c.l.b16 %v107
    %v324 = vunpack.c.h.b16 %v107
    %v325 = vunpack.c.l.b16 %v108
    %v326 = vunpack.c.h.b16 %v108
    %v327 = vunpack.c.l.b16 %v109
    %v328 = vunpack.c.h.b16 %v109
    %v329 = vunpack.c.l.b16 %v110
    %v330 = vunpack.c.h.b16 %v110
    %v331 = vunpack.c.l.b16 %v111
    %v332 = vunpack.c.h.b16 %v111
    %v333 = vunpack.c.l.b16 %v112
    %v334 = vunpack.c.h.b16 %v112
    %v335 = vunpack.c.l.b16 %v113
    %v336 = vunpack.c.h.b16 %v113
    %v337 = vunpack.c.l.b16 %v114
    %v338 = vunpack.c.h.b16 %v114
    %v339 = vunpack.c.l.b16 %v115
    %v340 = vunpack.c.h.b16 %v115
    %v341 = vunpack.c.l.b16 %v116
    %v342 = vunpack.c.h.b16 %v116
    %v343 = vunpack.c.l.b16 %v117
    %v344 = vunpack.c.h.b16 %v117
    %v345 = vunpack.c.l.b16 %v118
    %v346 = vunpack.c.h.b16 %v118
    %v347 = vunpack.c.l.b16 %v119
    %v348 = vunpack.c.h.b16 %v119
    %v349 = vunpack.c.l.b16 %v120
    %v350 = vunpack.c.h.b16 %v120
    %v351 = vunpack.c.l.b16 %v121
    %v352 = vunpack.c.h.b16 %v121
    %v353 = vunpack.c.l.b16 %v122
    %v354 = vunpack.c.h.b16 %v122
    %v355 = vunpack.c.l.b16 %v123
    %v356 = vunpack.c.h.b16 %v123
    %v357 = vunpack.c.l.b16 %v124
    %v358 = vunpack.c.h.b16 %v124
    %v359 = vunpack.c.l.b16 %v125
    %v360 = vunpack.c.h.b16 %v125
    %v361 = vunpack.c.l.b16 %v126
    %v362 = vunpack.c.h.b16 %v126
    %v363 = vunpack.c.l.b16 %v127
    %v364 = vunpack.c.h.b16 %v127
    %v365 = vunpack.c.l.b16 %v128
    %v366 = vunpack.c.h.b16 %v128
    %v367 = vunpack.c.l.b16 %v129
    %v368 = vunpack.c.h.b16 %v129
    %v369 = vunpack.c.l.b16 %v130
    %v370 = vunpack.c.h.b16 %v130
    %v371 = vunpack.c.l.b16 %v131
    %v372 = vunpack.c.h.b16 %v131
    %v373 = vunpack.c.l.b16 %v132
    %v374 = vunpack.c.h.b16 %v132
    %v375 = vunpack.c.l.b16 %v133
    %v376 = vunpack.c.h.b16 %v133
    %v377 = vunpack.c.l.b16 %v134
    %v378 = vunpack.c.h.b16 %v134
    %v379 = vunpack.c.l.b16 %v135
    %v380 = vunpack.c.h.b16 %v135
    %v381 = vpack.c.b16 %v249, %v243
    %v382 = vpack.c.b16 %v250, %v244
    %v383 = vpack.c.b16 %v251, %v245
    %v384 = vpack.c.b16 %v252, %v246
    %v385 = vpack.c.b16 %v253, %v247
    %v386 = vpack.c.b16 %v254, %v248
    %v387 = vpack.c.b16 %v261, %v255
    %v388 = vpack.c.b16 %v262, %v256
    %v389 = vpack.c.b16 %v263, %v257
    %v390 = vpack.c.b16 %v264, %v258
    %v391 = vpack.c.b16 %v265, %v259
    %v392 = vpack.c.b16 %v266, %v260
    %v393 = vpack.c.b16 %v273, %v267
    %v394 = vpack.c.b16 %v274, %v268
    %v395 = vpack.c.b16 %v275, %v269
    %v396 = vpack.c.b16 %v276, %v270
    %v397 = vpack.c.b16 %v277, %v271
    %v398 = vpack.c.b16 %v278, %v272
    %v399 = vpack.c.b16 %v285, %v279
    %v400 = vpack.c.b16 %v286, %v280
    %v401 = vpack.c.b16 %v287, %v281
    %v402 = vpack.c.b16 %v288, %v282
    %v403 = vpack.c.b16 %v289, %v283
    %v404 = vpack.c.b16 %v290, %v284
    %v405 = vpack.c.b16 %v297, %v291
    %v406 = vpack.c.b16 %v298, %v292
    %v407 = vpack.c.b16 %v299, %v293
    %v408 = vpack.c.b16 %v300, %v294
    %v409 = vpack.c.b16 %v301, %v295
    %v410 = vpack.c.b16 %v302, %v296
    %v411 = vpack.c.b16 %v309, %v303
    %v412 = vpack.c.b16 %v310, %v304
    %v413 = vpack.c.b16 %v311, %v305
    %v414 = vpack.c.b16 %v312, %v306
    %v415 = vpack.c.b16 %v313, %v307
    %v416 = vpack.c.b16 %v314, %v308
    %v417 = vpack.c.b16 %v321, %v315
    %v418 = vpack.c.b16 %v322, %v316
    %v419 = vpack.c.b16 %v323, %v317
    %v420 = vpack.c.b16 %v324, %v318
    %v421 = vpack.c.b16 %v325, %v319
    %v422 = vpack.c.b16 %v326, %v320
    %v423 = vpack.c.b16 %v333, %v327
    %v424 = vpack.c.b16 %v334, %v328
    %v425 = vpack.c.b16 %v335, %v329
    %v426 = vpack.c.b16 %v336, %v330
    %v427 = vpack.c.b16 %v337, %v331
    %v428 = vpack.c.b16 %v338, %v332
    %v429 = vpack.c.b16 %v345, %v339
    %v430 = vpack.c.b16 %v346, %v340
    %v431 = vpack.c.b16 %v347, %v341
    %v432 = vpack.c.b16 %v348, %v342
    %v433 = vpack.c.b16 %v349, %v343
    %v434 = vpack.c.b16 %v350, %v344
    %v435 = vpack.c.b16 %v357, %v351
    %v436 = vpack.c.b16 %v358, %v352
    %v437 = vpack.c.b16 %v359, %v353
    %v438 = vpack.c.b16 %v360, %v354
    %v439 = vpack.c.b16 %v361, %v355
    %v440 = vpack.c.b16 %v362, %v356
    %v441 = vpack.c.b16 %v369, %v363
    %v442 = vpack.c.b16 %v370, %v364
    %v443 = vpack.c.b16 %v371, %v365
    %v444 = vpack.c.b16 %v372, %v366
    %v445 = vpack.c.b16 %v373, %v367
    %v446 = vpack.c.b16 %v374, %v368
    %v447 = vpack.c.b16 %v375, %v375
    %v448 = vpack.c.b16 %v376, %v376
    %v449 = vpack.c.b16 %v377, %v377
    %v450 = vpack.c.b16 %v378, %v378
    %v451 = vpack.c.b16 %v379, %v379
    %v452 = vpack.c.b16 %v380, %v380
    %vm519 = vcmask 424960
    %v521 = vsel %vm519, %v172, 0
    %vm523 = vcmask 1041408
    %v525 = vsel %vm523, %v447, 0
    %v528 = vsel %vm523, %v448, 0
    %v531 = vsel %vm523, %v449, 0
    %v534 = vsel %vm523, %v450, 0
    %v537 = vsel %vm523, %v451, 0
    %v540 = vsel %vm523, %v452, 0
    %542 = vmatprep.subr.bf16.mxu0 %v382
    %543 = vmatpush1.bf16.msra.mxu0 %v381
    %544 = vmatprep.subr.bf16.mxu0 %v388
    %545 = vmatpush1.bf16.msra.mxu0 %v387
    %546 = vmatprep.subr.bf16.mxu0 %v394
    %547 = vmatpush1.bf16.msra.mxu0 %v393
    %548 = vmatprep.subr.bf16.mxu0 %v400
    %549 = vmatpush1.bf16.msra.mxu0 %v399
    %550 = vmatprep.subr.bf16.mxu0 %v406
    %551 = vmatpush1.bf16.msra.mxu0 %v405
    %552 = vmatprep.subr.bf16.mxu0 %v412
    %553 = vmatpush1.bf16.msra.mxu0 %v411
    %554 = vmatprep.subr.bf16.mxu0 %v418
    %555 = vmatpush1.bf16.msra.mxu0 %v417
    %556 = vmatprep.subr.bf16.mxu0 %v424
    %557 = vmatpush1.bf16.msra.mxu0 %v423
    %558 = vmatprep.subr.bf16.mxu0 %v430
    %559 = vmatpush1.bf16.msra.mxu0 %v429
    %560 = vmatprep.subr.bf16.mxu0 %v436
    %561 = vmatpush1.bf16.msra.mxu0 %v435
    %562 = vmatprep.subr.bf16.mxu0 %v442
    %563 = vmatpush1.bf16.msra.mxu0 %v441
    %564 = vmatprep.subr.bf16.mxu0 %v528
    %565 = vmatpush1.bf16.msra.mxu0 %v525
    %566 = vmatprep.subr.bf16.mxu0 0
    %567 = vmatpush1.bf16.msra.mxu0 0
    %568 = vmatprep.subr.bf16.mxu0 0
    %569 = vmatpush1.bf16.msra.mxu0 0
    %570 = vmatprep.subr.bf16.mxu0 0
    %571 = vmatpush1.bf16.msra.mxu0 0
    %572 = vmatprep.subr.bf16.mxu0 0
    %573 = vmatpush1.bf16.msra.mxu0 0
    %574 = vmatprep.mubr.bf16.mxu0 %v521
    %575 = vmatmul.mubr.bf16.gmra.mrb[0].mxu0 %v171
    %v576 = vpop.f32.mrb[0].mxu0
    %v577 = vadd.f32 %v141, %v576
    %v578 = vpop.f32.mrb[0].mxu0
    %v579 = vadd.f32 %v145, %v578
    %v580 = vpop.f32.mrb[0].mxu0
    %v581 = vpop.f32.mrb[0].mxu0
    %582 = vdwg.mxu0
    %583 = vmatprep.subr.bf16.mxu0 %v384
    %584 = vmatpush1.bf16.msra.mxu0 %v383
    %585 = vmatprep.subr.bf16.mxu0 %v390
    %586 = vmatpush1.bf16.msra.mxu0 %v389
    %587 = vmatprep.subr.bf16.mxu0 %v396
    %588 = vmatpush1.bf16.msra.mxu0 %v395
    %589 = vmatprep.subr.bf16.mxu0 %v402
    %590 = vmatpush1.bf16.msra.mxu0 %v401
    %591 = vmatprep.subr.bf16.mxu0 %v408
    %592 = vmatpush1.bf16.msra.mxu0 %v407
    %593 = vmatprep.subr.bf16.mxu0 %v414
    %594 = vmatpush1.bf16.msra.mxu0 %v413
    %595 = vmatprep.subr.bf16.mxu0 %v420
    %596 = vmatpush1.bf16.msra.mxu0 %v419
    %597 = vmatprep.subr.bf16.mxu0 %v426
    %598 = vmatpush1.bf16.msra.mxu0 %v425
    %599 = vmatprep.subr.bf16.mxu0 %v432
    %600 = vmatpush1.bf16.msra.mxu0 %v431
    %601 = vmatprep.subr.bf16.mxu0 %v438
    %602 = vmatpush1.bf16.msra.mxu0 %v437
    %603 = vmatprep.subr.bf16.mxu0 %v444
    %604 = vmatpush1.bf16.msra.mxu0 %v443
    %605 = vmatprep.subr.bf16.mxu0 %v534
    %606 = vmatpush1.bf16.msra.mxu0 %v531
    %607 = vmatprep.subr.bf16.mxu0 0
    %608 = vmatpush1.bf16.msra.mxu0 0
    %609 = vmatprep.subr.bf16.mxu0 0
    %610 = vmatpush1.bf16.msra.mxu0 0
    %611 = vmatprep.subr.bf16.mxu0 0
    %612 = vmatpush1.bf16.msra.mxu0 0
    %613 = vmatprep.subr.bf16.mxu0 0
    %614 = vmatpush1.bf16.msra.mxu0 0
    %615 = vmatprep.mubr.bf16.mxu0 %v521
    %616 = vmatmul.mubr.bf16.gmra.mrb[0].mxu0 %v171
    %v617 = vpop.f32.mrb[0].mxu0
    %v618 = vadd.f32 %v149, %v617
    %v619 = vpop.f32.mrb[0].mxu0
    %v620 = vadd.f32 %v153, %v619
    %v621 = vpop.f32.mrb[0].mxu0
    %v622 = vpop.f32.mrb[0].mxu0
    %623 = vdwg.mxu0
    %624 = vmatprep.subr.bf16.mxu0 %v386
    %625 = vmatpush1.bf16.msra.mxu0 %v385
    %626 = vmatprep.subr.bf16.mxu0 %v392
    %627 = vmatpush1.bf16.msra.mxu0 %v391
    %628 = vmatprep.subr.bf16.mxu0 %v398
    %629 = vmatpush1.bf16.msra.mxu0 %v397
    %630 = vmatprep.subr.bf16.mxu0 %v404
    %631 = vmatpush1.bf16.msra.mxu0 %v403
    %632 = vmatprep.subr.bf16.mxu0 %v410
    %633 = vmatpush1.bf16.msra.mxu0 %v409
    %634 = vmatprep.subr.bf16.mxu0 %v416
    %635 = vmatpush1.bf16.msra.mxu0 %v415
    %636 = vmatprep.subr.bf16.mxu0 %v422
    %637 = vmatpush1.bf16.msra.mxu0 %v421
    %638 = vmatprep.subr.bf16.mxu0 %v428
    %639 = vmatpush1.bf16.msra.mxu0 %v427
    %640 = vmatprep.subr.bf16.mxu0 %v434
    %641 = vmatpush1.bf16.msra.mxu0 %v433
    %642 = vmatprep.subr.bf16.mxu0 %v440
    %643 = vmatpush1.bf16.msra.mxu0 %v439
    %644 = vmatprep.subr.bf16.mxu0 %v446
    %645 = vmatpush1.bf16.msra.mxu0 %v445
    %646 = vmatprep.subr.bf16.mxu0 %v540
    %647 = vmatpush1.bf16.msra.mxu0 %v537
    %648 = vmatprep.subr.bf16.mxu0 0
    %649 = vmatpush1.bf16.msra.mxu0 0
    %650 = vmatprep.subr.bf16.mxu0 0
    %651 = vmatpush1.bf16.msra.mxu0 0
    %652 = vmatprep.subr.bf16.mxu0 0
    %653 = vmatpush1.bf16.msra.mxu0 0
    %654 = vmatprep.subr.bf16.mxu0 0
    %655 = vmatpush1.bf16.msra.mxu0 0
    %656 = vmatprep.mubr.bf16.mxu0 %v521
    %657 = vmatmul.mubr.bf16.gmra.mrb[0].mxu0 %v171
    %v658 = vpop.f32.mrb[0].mxu0
    %v659 = vadd.f32 %v157, %v658
    %v660 = vpop.f32.mrb[0].mxu0
    %v661 = vadd.f32 %v161, %v660
    %v662 = vpop.f32.mrb[0].mxu0
    %v663 = vpop.f32.mrb[0].mxu0
    %664 = vdwg.mxu0
    %v665 = vmax.f32 %v577, 0.0
    %v666 = vmax.f32 %v579, 0.0
    %v667 = vmax.f32 %v618, 0.0
    %v668 = vmax.f32 %v620, 0.0
    %v669 = vmax.f32 %v659, 0.0
    %v670 = vmax.f32 %v661, 0.0
    %v671 = vmax.f32 %v665, %v668
    %v672 = vmax.f32 %v666, %v669
    %v673 = vmax.f32 %v667, %v670
    %v674 = vpack.c.bf16 %v671, %v671
    %v675 = vpack.c.bf16 %v672, %v672
    %v676 = vpack.c.bf16 %v673, %v673
    %v677 = vld [vmem:[#allocation6] sm:$0xf]
    %v678 = vld [vmem:[#allocation6 + $0x4] sm:$0xf]
    %v679 = vld [vmem:[#allocation6 + $0x8] sm:$0xf]
    %v680 = vld [vmem:[#allocation6 + $0xc] sm:$0xf]
    %v681 = vld [vmem:[#allocation6 + $0x10] sm:$0xf]
    %v682 = vld [vmem:[#allocation6 + $0x14] sm:$0xf]
    %v683 = vld [vmem:[#allocation6 + $0x18] sm:$0xf]
    %v684 = vld [vmem:[#allocation6 + $0x1c] sm:$0xf]
    %v685 = vld [vmem:[#allocation6 + $0x20] sm:$0xf]
    %v686 = vld [vmem:[#allocation6 + $0x24] sm:$0xf]
    %v687 = vld [vmem:[#allocation6 + $0x28] sm:$0xf]
    %v688 = vld [vmem:[#allocation6 + $0x2c] sm:$0xf]
    %v689 = vld [vmem:[#allocation6 + $0x30] sm:$0xf]
    %v690 = vld [vmem:[#allocation6 + $0x34] sm:$0xf]
    %v691 = vld [vmem:[#allocation6 + $0x38] sm:$0xf]
    %v692 = vld [vmem:[#allocation6 + $0x3c] sm:$0xf]
    %v693 = vld [vmem:[#allocation6 + $0x40] sm:$0xf]
    %v694 = vld [vmem:[#allocation6 + $0x44] sm:$0xf]
    %v695 = vld [vmem:[#allocation6 + $0x48] sm:$0xf]
    %v696 = vld [vmem:[#allocation6 + $0x4c] sm:$0xf]
    %v697 = vld [vmem:[#allocation6 + $0x50] sm:$0xf]
    %v698 = vld [vmem:[#allocation6 + $0x54] sm:$0xf]
    %v699 = vld [vmem:[#allocation6 + $0x58] sm:$0xf]
    %v700 = vld [vmem:[#allocation6 + $0x5c] sm:$0xf]
    %v701 = vld [vmem:[#allocation6 + $0x60] sm:$0xf]
    %v702 = vld [vmem:[#allocation6 + $0x64] sm:$0xf]
    %v703 = vld [vmem:[#allocation6 + $0x68] sm:$0xf]
    %v704 = vld [vmem:[#allocation6 + $0x6c] sm:$0xf]
    %v705 = vld [vmem:[#allocation6 + $0x70] sm:$0xf]
    %v706 = vld [vmem:[#allocation6 + $0x74] sm:$0xf]
    %v707 = vld [vmem:[#allocation6 + $0x78] sm:$0xf]
    %v708 = vld [vmem:[#allocation6 + $0x7c] sm:$0xf]
    %v709 = vld [vmem:[#allocation6 + $0x80] sm:$0xf]
    %v710 = vld [vmem:[#allocation6 + $0x84] sm:$0xf]
    %v711 = vld [vmem:[#allocation6 + $0x88] sm:$0xf]
    %v712 = vld [vmem:[#allocation6 + $0x8c] sm:$0xf]
    %v713 = vld [vmem:[#allocation6 + $0x90] sm:$0xf]
    %v714 = vld [vmem:[#allocation6 + $0x94] sm:$0xf]
    %v715 = vld [vmem:[#allocation6 + $0x98] sm:$0xf]
    %v716 = vld [vmem:[#allocation6 + $0x9c] sm:$0xf]
    %v717 = vld [vmem:[#allocation6 + $0xa0] sm:$0xf]
    %v718 = vld [vmem:[#allocation6 + $0xa4] sm:$0xf]
    %v719 = vld [vmem:[#allocation6 + $0xa8] sm:$0xf]
    %v720 = vld [vmem:[#allocation6 + $0xac] sm:$0xf]
    %v721 = vld [vmem:[#allocation6 + $0xb0] sm:$0xf]
    %v722 = vld [vmem:[#allocation6 + $0xb4] sm:$0xf]
    %v723 = vld [vmem:[#allocation6 + $0xb8] sm:$0xf]
    %v724 = vld [vmem:[#allocation6 + $0xbc] sm:$0xf]
    %v725 = vld [vmem:[%s4] sm:$0x1]
    %v727 = vlaneseq
    %v728 = vshrl.u32 %v727, 7
    %v729 = vsub.s32 0, %v728
    %v730 = vrot.slane %v725, %v729
    %v780 = vunpack.c.l.b16 %v677
    %v781 = vunpack.c.l.b16 %v678
    %v782 = vunpack.c.l.b16 %v679
    %v783 = vunpack.c.l.b16 %v680
    %v784 = vunpack.c.l.b16 %v681
    %v785 = vunpack.c.l.b16 %v682
    %v786 = vunpack.c.l.b16 %v683
    %v787 = vunpack.c.l.b16 %v684
    %v788 = vunpack.c.l.b16 %v685
    %v789 = vunpack.c.l.b16 %v686
    %v790 = vunpack.c.l.b16 %v687
    %v791 = vunpack.c.l.b16 %v688
    %v792 = vunpack.c.l.b16 %v689
    %v793 = vunpack.c.l.b16 %v690
    %v794 = vunpack.c.l.b16 %v691
    %v795 = vunpack.c.l.b16 %v692
    %v796 = vunpack.c.l.b16 %v693
    %v797 = vunpack.c.l.b16 %v694
    %v798 = vunpack.c.l.b16 %v695
    %v799 = vunpack.c.l.b16 %v696
    %v800 = vunpack.c.l.b16 %v697
    %v801 = vunpack.c.l.b16 %v698
    %v802 = vunpack.c.l.b16 %v699
    %v803 = vunpack.c.l.b16 %v700
    %v804 = vunpack.c.l.b16 %v701
    %v805 = vunpack.c.l.b16 %v702
    %v806 = vunpack.c.l.b16 %v703
    %v807 = vunpack.c.l.b16 %v704
    %v808 = vunpack.c.l.b16 %v705
    %v809 = vunpack.c.l.b16 %v706
    %v810 = vunpack.c.l.b16 %v707
    %v811 = vunpack.c.l.b16 %v708
    %v812 = vunpack.c.l.b16 %v709
    %v813 = vunpack.c.l.b16 %v710
    %v814 = vunpack.c.l.b16 %v711
    %v815 = vunpack.c.l.b16 %v712
    %v816 = vunpack.c.l.b16 %v713
    %v817 = vunpack.c.l.b16 %v714
    %v818 = vunpack.c.l.b16 %v715
    %v819 = vunpack.c.l.b16 %v716
    %v820 = vunpack.c.l.b16 %v717
    %v821 = vunpack.c.l.b16 %v718
    %v822 = vunpack.c.l.b16 %v719
    %v823 = vunpack.c.l.b16 %v720
    %v824 = vunpack.c.l.b16 %v721
    %v825 = vunpack.c.l.b16 %v722
    %v826 = vunpack.c.l.b16 %v723
    %v827 = vunpack.c.l.b16 %v724
    %v828 = vpack.c.b16 %v781, %v780
    %v829 = vpack.c.b16 %v783, %v782
    %v830 = vpack.c.b16 %v785, %v784
    %v831 = vpack.c.b16 %v787, %v786
    %v832 = vpack.c.b16 %v789, %v788
    %v833 = vpack.c.b16 %v791, %v790
    %v834 = vpack.c.b16 %v793, %v792
    %v835 = vpack.c.b16 %v795, %v794
    %v836 = vpack.c.b16 %v797, %v796
    %v837 = vpack.c.b16 %v799, %v798
    %v838 = vpack.c.b16 %v801, %v800
    %v839 = vpack.c.b16 %v803, %v802
    %v840 = vpack.c.b16 %v805, %v804
    %v841 = vpack.c.b16 %v807, %v806
    %v842 = vpack.c.b16 %v809, %v808
    %v843 = vpack.c.b16 %v811, %v810
    %v844 = vpack.c.b16 %v813, %v812
    %v845 = vpack.c.b16 %v815, %v814
    %v846 = vpack.c.b16 %v817, %v816
    %v847 = vpack.c.b16 %v819, %v818
    %v848 = vpack.c.b16 %v821, %v820
    %v849 = vpack.c.b16 %v823, %v822
    %v850 = vpack.c.b16 %v825, %v824
    %v851 = vpack.c.b16 %v827, %v826
    %876 = vmatprep.subr.bf16.mxu0 0
    %877 = vmatpush1.bf16.msra.mxu0 %v828
    %878 = vmatprep.subr.bf16.mxu0 0
    %879 = vmatpush1.bf16.msra.mxu0 %v829
    %880 = vmatprep.subr.bf16.mxu0 0
    %881 = vmatpush1.bf16.msra.mxu0 %v830
    %882 = vmatprep.subr.bf16.mxu0 0
    %883 = vmatpush1.bf16.msra.mxu0 %v831
    %884 = vmatprep.subr.bf16.mxu0 0
    %885 = vmatpush1.bf16.msra.mxu0 %v832
    %886 = vmatprep.subr.bf16.mxu0 0
    %887 = vmatpush1.bf16.msra.mxu0 %v833
    %888 = vmatprep.subr.bf16.mxu0 0
    %889 = vmatpush1.bf16.msra.mxu0 %v834
    %890 = vmatprep.subr.bf16.mxu0 0
    %891 = vmatpush1.bf16.msra.mxu0 %v835
    %892 = vmatprep.subr.bf16.mxu0 0
    %893 = vmatpush1.bf16.msra.mxu0 %v836
    %894 = vmatprep.subr.bf16.mxu0 0
    %895 = vmatpush1.bf16.msra.mxu0 %v837
    %896 = vmatprep.subr.bf16.mxu0 0
    %897 = vmatpush1.bf16.msra.mxu0 %v838
    %898 = vmatprep.subr.bf16.mxu0 0
    %899 = vmatpush1.bf16.msra.mxu0 %v839
    %900 = vmatprep.subr.bf16.mxu0 0
    %901 = vmatpush1.bf16.msra.mxu0 %v840
    %902 = vmatprep.subr.bf16.mxu0 0
    %903 = vmatpush1.bf16.msra.mxu0 %v841
    %904 = vmatprep.subr.bf16.mxu0 0
    %905 = vmatpush1.bf16.msra.mxu0 %v842
    %906 = vmatprep.subr.bf16.mxu0 0
    %907 = vmatpush1.bf16.msra.mxu0 %v843
    %908 = vmatprep.mubr.bf16.mxu0 %v675
    %909 = vmatmul.mubr.bf16.gmra.mrb[0].mxu0 %v674
    %v910 = vpop.f32.mrb[0].mxu0
    %v911 = vadd.f32 %v730, %v910
    %v912 = vpop.f32.mrb[0].mxu0
    %v913 = vpop.f32.mrb[0].mxu0
    %v914 = vpop.f32.mrb[0].mxu0
    %915 = vdwg.mxu0
    %916 = vmatprep.subr.bf16.mxu0 0
    %917 = vmatpush1.bf16.msra.mxu0 %v844
    %918 = vmatprep.subr.bf16.mxu0 0
    %919 = vmatpush1.bf16.msra.mxu0 %v845
    %920 = vmatprep.subr.bf16.mxu0 0
    %921 = vmatpush1.bf16.msra.mxu0 %v846
    %922 = vmatprep.subr.bf16.mxu0 0
    %923 = vmatpush1.bf16.msra.mxu0 %v847
    %924 = vmatprep.subr.bf16.mxu0 0
    %925 = vmatpush1.bf16.msra.mxu0 %v848
    %926 = vmatprep.subr.bf16.mxu0 0
    %927 = vmatpush1.bf16.msra.mxu0 %v849
    %928 = vmatprep.subr.bf16.mxu0 0
    %929 = vmatpush1.bf16.msra.mxu0 %v850
    %930 = vmatprep.subr.bf16.mxu0 0
    %931 = vmatpush1.bf16.msra.mxu0 %v851
    %932 = vmatprep.subr.bf16.mxu0 0
    %933 = vmatpush1.bf16.msra.mxu0 0
    %934 = vmatprep.subr.bf16.mxu0 0
    %935 = vmatpush1.bf16.msra.mxu0 0
    %936 = vmatprep.subr.bf16.mxu0 0
    %937 = vmatpush1.bf16.msra.mxu0 0
    %938 = vmatprep.subr.bf16.mxu0 0
    %939 = vmatpush1.bf16.msra.mxu0 0
    %940 = vmatprep.subr.bf16.mxu0 0
    %941 = vmatpush1.bf16.msra.mxu0 0
    %942 = vmatprep.subr.bf16.mxu0 0
    %943 = vmatpush1.bf16.msra.mxu0 0
    %944 = vmatprep.subr.bf16.mxu0 0
    %945 = vmatpush1.bf16.msra.mxu0 0
    %946 = vmatprep.subr.bf16.mxu0 0
    %947 = vmatpush1.bf16.msra.mxu0 0
    %948 = vmatprep.mubr.bf16.mxu0 0
    %949 = vmatmul.mubr.bf16.gmra.mrb[0].mxu0 %v676
    %v950 = vpop.f32.mrb[0].mxu0
    %v951 = vadd.f32 %v911, %v950
    %v952 = vpop.f32.mrb[0].mxu0
    %v953 = vpop.f32.mrb[0].mxu0
    %v954 = vpop.f32.mrb[0].mxu0
    %955 = vdwg.mxu0
    %v956 = vmax.f32 %v951, 0.0
    %v957 = vpack.c.bf16 %v956, %v956
    %v958 = vld [vmem:[%s5] sm:$0xf]
    %v959 = vld [vmem:[%s5 + $0x4] sm:$0xf]
    %v960 = vld [vmem:[%s5 + $0x8] sm:$0xf]
    %v961 = vld [vmem:[%s5 + $0xc] sm:$0xf]
    %v962 = vld [vmem:[%s5 + $0x10] sm:$0xf]
    %v963 = vld [vmem:[%s5 + $0x14] sm:$0xf]
    %v964 = vld [vmem:[%s5 + $0x18] sm:$0xf]
    %v965 = vld [vmem:[%s5 + $0x1c] sm:$0xf]
    %v966 = vld [vmem:[%s5 + $0x20] sm:$0xf]
    %v967 = vld [vmem:[%s5 + $0x24] sm:$0xf]
    %v968 = vld [vmem:[%s5 + $0x28] sm:$0xf]
    %v969 = vld [vmem:[%s5 + $0x2c] sm:$0xf]
    %v970 = vld [vmem:[%s5 + $0x30] sm:$0xf]
    %v971 = vld [vmem:[%s5 + $0x34] sm:$0xf]
    %v972 = vld [vmem:[%s5 + $0x38] sm:$0xf]
    %v973 = vld [vmem:[%s5 + $0x3c] sm:$0xf]
    %v974 = vld [vmem:[%s6] sm:$0x1]
    %v976 = vlaneseq
    %v977 = vshrl.u32 %v976, 7
    %v978 = vsub.s32 0, %v977
    %v979 = vrot.slane %v974, %v978
    %v997 = vunpack.c.l.b16 %v958
    %v998 = vunpack.c.l.b16 %v959
    %v999 = vunpack.c.l.b16 %v960
    %v1000 = vunpack.c.l.b16 %v961
    %v1001 = vunpack.c.l.b16 %v962
    %v1002 = vunpack.c.l.b16 %v963
    %v1003 = vunpack.c.l.b16 %v964
    %v1004 = vunpack.c.l.b16 %v965
    %v1005 = vunpack.c.l.b16 %v966
    %v1006 = vunpack.c.l.b16 %v967
    %v1007 = vunpack.c.l.b16 %v968
    %v1008 = vunpack.c.l.b16 %v969
    %v1009 = vunpack.c.l.b16 %v970
    %v1010 = vunpack.c.l.b16 %v971
    %v1011 = vunpack.c.l.b16 %v972
    %v1012 = vunpack.c.l.b16 %v973
    %v1013 = vpack.c.b16 %v998, %v997
    %v1014 = vpack.c.b16 %v1000, %v999
    %v1015 = vpack.c.b16 %v1002, %v1001
    %v1016 = vpack.c.b16 %v1004, %v1003
    %v1017 = vpack.c.b16 %v1006, %v1005
    %v1018 = vpack.c.b16 %v1008, %v1007
    %v1019 = vpack.c.b16 %v1010, %v1009
    %v1020 = vpack.c.b16 %v1012, %v1011
    %1029 = vmatprep.subr.bf16.mxu0 0
    %1030 = vmatpush1.bf16.msra.mxu0 %v1013
    %1031 = vmatprep.subr.bf16.mxu0 0
    %1032 = vmatpush1.bf16.msra.mxu0 %v1014
    %1033 = vmatprep.subr.bf16.mxu0 0
    %1034 = vmatpush1.bf16.msra.mxu0 %v1015
    %1035 = vmatprep.subr.bf16.mxu0 0
    %1036 = vmatpush1.bf16.msra.mxu0 %v1016
    %1037 = vmatprep.subr.bf16.mxu0 0
    %1038 = vmatpush1.bf16.msra.mxu0 %v1017
    %1039 = vmatprep.subr.bf16.mxu0 0
    %1040 = vmatpush1.bf16.msra.mxu0 %v1018
    %1041 = vmatprep.subr.bf16.mxu0 0
    %1042 = vmatpush1.bf16.msra.mxu0 %v1019
    %1043 = vmatprep.subr.bf16.mxu0 0
    %1044 = vmatpush1.bf16.msra.mxu0 %v1020
    %1045 = vmatprep.subr.bf16.mxu0 0
    %1046 = vmatpush1.bf16.msra.mxu0 0
    %1047 = vmatprep.subr.bf16.mxu0 0
    %1048 = vmatpush1.bf16.msra.mxu0 0
    %1049 = vmatprep.subr.bf16.mxu0 0
    %1050 = vmatpush1.bf16.msra.mxu0 0
    %1051 = vmatprep.subr.bf16.mxu0 0
    %1052 = vmatpush1.bf16.msra.mxu0 0
    %1053 = vmatprep.subr.bf16.mxu0 0
    %1054 = vmatpush1.bf16.msra.mxu0 0
    %1055 = vmatprep.subr.bf16.mxu0 0
    %1056 = vmatpush1.bf16.msra.mxu0 0
    %1057 = vmatprep.subr.bf16.mxu0 0
    %1058 = vmatpush1.bf16.msra.mxu0 0
    %1059 = vmatprep.subr.bf16.mxu0 0
    %1060 = vmatpush1.bf16.msra.mxu0 0
    %1061 = vmatprep.mubr.bf16.mxu0 0
    %1062 = vmatmul.mubr.bf16.gmra.mrb[0].mxu0 %v957
    %v1063 = vpop.f32.mrb[0].mxu0
    %v1064 = vadd.f32 %v979, %v1063
    %v1065 = vpop.f32.mrb[0].mxu0
    %v1066 = vpop.f32.mrb[0].mxu0
    %v1067 = vpop.f32.mrb[0].mxu0
    %1068 = vdwg.mxu0
    %v1069 = vpack.c.bf16 %v1064, %v1064
    %1070 = vst [vmem:[%s7] sm:$0xf] %v1069
    // Predicated region
    $region42: #{simple_cnn_forward.1} parent=1 // pred_check
      _
    $region43: #{simple_cnn_forward.1} parent=1 // pred_check_branch
      %1072 = sbr.rel (0) target = $region45
    $region44: #{simple_cnn_forward.1} parent=1 // pred_region
      _
    $region45: #{simple_cnn_forward.1} parent=1 // pred_fallthru
      _
    // Predicated region
    $region46: #{simple_cnn_forward.1} parent=1 // pred_check
      _
    $region47: #{simple_cnn_forward.1} parent=1 // pred_check_branch
      %1074 = sbr.rel (0) target = $region49
    $region48: #{simple_cnn_forward.1} parent=1 // pred_region
      _
    $region49: #{simple_cnn_forward.1} parent=1 // pred_fallthru
      _
    %1075 = vsyncpa [#allocation3], 1
    %1076 = vsyncpa [#allocation5], 1

</llo_original>
